<compile_context>
chip_gen: v7x
topology: tpu7x:2x2x1
jax: 0.10.0
libtpu: 0.0.40
codegen_flags: <defaults>
</compile_context>

<pallas_src>
import functools

import jax
import jax.numpy as jnp
from jax import lax
from jax.experimental import pallas as pl
from jax.experimental.pallas import tpu as pltpu

NEG_SLOPE = 0.01  # nn.LeakyReLU default negative_slope
_VMEM_LIMIT = 32 * 1024 * 1024  # safe on v5e/v6e (128 MiB) and v7x (64 MiB)


# --------------------------------------------------------------------------
# Tile-size helpers
# --------------------------------------------------------------------------
def _pick_lane_tile(n, max_tile=2048):
    """Largest tile <= max_tile that divides n and is a multiple of 128,
    falling back to the full extent (always legal)."""
    if n <= max_tile:
        return n
    for t in range(max_tile - max_tile % 128, 0, -128):
        if n % t == 0:
            return t
    return n


def _pick_row_tile(h, w, max_elems=2048):
    """Row tile for the 3x3 conv.  Tiling the row axis is only legal when the
    output block's last two dims stay (multiple of 8, multiple of 128)."""
    if (w % 128) or (h % 8):
        return h  # cannot tile legally -> use full row extent
    best = 8
    for th in range(8, h + 1, 8):
        if h % th == 0 and th * w <= max_elems:
            best = th
    return best


# --------------------------------------------------------------------------
# Pallas kernels
# --------------------------------------------------------------------------
def _conv1x1_kernel(x_ref, w_ref, b_ref, o_ref):
    # x_ref: (Cin, TN)   w_ref: (Cout, Cin)   b_ref: (Cout, 1)   o_ref: (Cout, TN)
    acc = jnp.dot(w_ref[...], x_ref[...], preferred_element_type=jnp.float32)
    o_ref[...] = (acc + b_ref[...]).astype(o_ref.dtype)


def _conv3x3_kernel(xp_ref, w_ref, b_ref, *rest, th, w_out, cin, cout,
                    act, has_res):
    # xp_ref: (Cin, H+2, W+2)  full padded image of one batch element
    #         (resident in VMEM across all row tiles of that batch).
    # w_ref : (Cout, 9*Cin)    3x3 kernel with taps folded into K.
    # b_ref : (Cout, 1)
    # rest  : [residual (Cout, TH, W)] + [o_ref (Cout, TH, W)]
    if has_res:
        r_ref, o_ref = rest
    else:
        (o_ref,) = rest

    r = pl.program_id(1)
    row0 = r * th
    if th % 8 == 0:
        row0 = pl.multiple_of(row0, 8)

    # One VMEM load of the (TH+2)-row window, then form the 9 shifted taps
    # with static slices and fold them into the contraction dim: (9*Cin, TH*W).
    window = xp_ref[:, pl.ds(row0, th + 2), :]          # (Cin, TH+2, W+2)
    taps = []
    for dy in range(3):
        for dx in range(3):
            t = window[:, dy:dy + th, dx:dx + w_out]    # (Cin, TH, W)
            taps.append(t.reshape(cin, th * w_out))
    tmat = jnp.concatenate(taps, axis=0)                # (9*Cin, TH*W)

    # Single lane-dense MXU matmul: (Cout, 9*Cin) @ (9*Cin, TH*W).
    acc = jnp.dot(w_ref[...], tmat, preferred_element_type=jnp.float32)
    acc = acc + b_ref[...]
    if has_res:
        acc = acc + r_ref[...].reshape(cout, th * w_out).astype(jnp.float32)
    if act:
        acc = jnp.where(acc >= 0, acc, NEG_SLOPE * acc)
    o_ref[...] = acc.reshape(cout, th, w_out).astype(o_ref.dtype)


# --------------------------------------------------------------------------
# Wrappers (layout / padding glue + pallas_call plumbing)
# --------------------------------------------------------------------------
def conv1x1(x, w, b, *, out_dtype=None):
    # x: (B, Cin, H, W) NCHW, w: (Cin, Cout), b: (Cout,)
    B, Cin, H, W = x.shape
    Cout = w.shape[1]
    HW = H * W
    out_dtype = out_dtype or x.dtype
    tn = _pick_lane_tile(HW)

    xf = x.reshape(B, Cin, HW)
    w2 = jnp.transpose(w).astype(x.dtype)           # (Cout, Cin)
    b2 = b.reshape(Cout, 1).astype(jnp.float32)

    out = pl.pallas_call(
        _conv1x1_kernel,
        grid=(B, HW // tn),
        in_specs=[
            pl.BlockSpec((None, Cin, tn), lambda bb, nn: (bb, 0, nn)),
            pl.BlockSpec((Cout, Cin), lambda bb, nn: (0, 0)),
            pl.BlockSpec((Cout, 1), lambda bb, nn: (0, 0)),
        ],
        out_specs=pl.BlockSpec((None, Cout, tn), lambda bb, nn: (bb, 0, nn)),
        out_shape=jax.ShapeDtypeStruct((B, Cout, HW), out_dtype),
        compiler_params=pltpu.CompilerParams(
            dimension_semantics=("parallel", "parallel"),
            vmem_limit_bytes=_VMEM_LIMIT),
    )(xf, w2, b2)
    return out.reshape(B, Cout, H, W)


def conv3x3(x, w, b, *, act=False, residual=None, out_dtype=None):
    # x: (B, Cin, H, W) NCHW, w: (3, 3, Cin, Cout) HWIO, b: (Cout,)
    B, Cin, H, W = x.shape
    Cout = w.shape[-1]
    out_dtype = out_dtype or x.dtype
    th = _pick_row_tile(H, W)
    n_rt = H // th

    xp = jnp.pad(x, ((0, 0), (0, 0), (1, 1), (1, 1)))           # (B, Cin, H+2, W+2)
    w2 = jnp.transpose(w.reshape(9 * Cin, Cout)).astype(x.dtype)  # (Cout, 9*Cin)
    b2 = b.reshape(Cout, 1).astype(jnp.float32)

    has_res = residual is not None
    kernel = functools.partial(_conv3x3_kernel, th=th, w_out=W,
                               cin=Cin, cout=Cout, act=act, has_res=has_res)

    in_specs = [
        # Full padded image per batch; block index constant across the row
        # tile axis so it is fetched once per batch element.
        pl.BlockSpec((None, Cin, H + 2, W + 2), lambda bb, rr: (bb, 0, 0, 0)),
        pl.BlockSpec((Cout, 9 * Cin), lambda bb, rr: (0, 0)),
        pl.BlockSpec((Cout, 1), lambda bb, rr: (0, 0)),
    ]
    args = [xp, w2, b2]
    if has_res:
        in_specs.append(
            pl.BlockSpec((None, Cout, th, W), lambda bb, rr: (bb, 0, rr, 0)))
        args.append(residual)

    out = pl.pallas_call(
        kernel,
        grid=(B, n_rt),
        in_specs=in_specs,
        out_specs=pl.BlockSpec((None, Cout, th, W),
                               lambda bb, rr: (bb, 0, rr, 0)),
        out_shape=jax.ShapeDtypeStruct((B, Cout, H, W), out_dtype),
        compiler_params=pltpu.CompilerParams(
            dimension_semantics=("parallel", "parallel"),
            vmem_limit_bytes=_VMEM_LIMIT),
    )(*args)
    return out


# --------------------------------------------------------------------------
# Transfer module: parameters + forward
# --------------------------------------------------------------------------
def init_params(key, layers, channels):
    C, C2 = channels, channels // 2

    def nrm(k, shape, scale=0.05):
        return scale * jax.random.normal(k, shape, jnp.float32)

    n_keys = 2 + 4 * layers + 4
    keys = iter(jax.random.split(key, n_keys))
    params = {
        "w0": nrm(next(keys), (2 * C + 1, C)),          # 1x1 conv (Cin, Cout)
        "b0": nrm(next(keys), (C,)),
        "blocks": [],
        "w_pen": nrm(next(keys), (3, 3, C, C2)),
        "b_pen": nrm(next(keys), (C2,)),
        "w_last": nrm(next(keys), (3, 3, C2, 3)),
        "b_last": nrm(next(keys), (3,)),
    }
    for _ in range(layers):
        params["blocks"].append({
            "w1": nrm(next(keys), (3, 3, C, C)),
            "b1": nrm(next(keys), (C,)),
            "w2": nrm(next(keys), (3, 3, C, C)),
            "b2": nrm(next(keys), (C,)),
        })
    return params


def transfer_forward(params, fea_left, fea_right, valid_mask,
                     compute_dtype=jnp.bfloat16):
    # fea_left, fea_right: (B, C, H, W) NCHW; valid_mask[0]: (B, 1, H, W)
    x = jnp.concatenate([fea_left, fea_right, valid_mask[0]], axis=1)
    x = x.astype(compute_dtype)

    # 1x1 conv: (2C+1) -> C
    x = conv1x1(x, params["w0"], params["b0"])

    # BasicBlocks (bn=False, unweighted shortcut): x = leaky(x + conv2(leaky(conv1(x))))
    for blk in params["blocks"]:
        y = conv3x3(x, blk["w1"], blk["b1"], act=True)
        x = conv3x3(y, blk["w2"], blk["b2"], act=True, residual=x)

    # Tail convs (no activation in the PyTorch module); final output in f32.
    x = conv3x3(x, params["w_pen"], params["b_pen"])
    x = conv3x3(x, params["w_last"], params["b_last"], out_dtype=jnp.float32)
    return x  # (B, 3, H, W) NCHW


# --------------------------------------------------------------------------
# Pure-JAX reference (for correctness check only)
# --------------------------------------------------------------------------
def _ref_conv(x_nhwc, w_hwio, b):
    y = lax.conv_general_dilated(
        x_nhwc, w_hwio, window_strides=(1, 1), padding="SAME",
        dimension_numbers=("NHWC", "HWIO", "NHWC"))
    return y + b


def _ref_leaky(x):
    return jnp.where(x >= 0, x, NEG_SLOPE * x)


def reference_forward(params, fea_left, fea_right, valid_mask):
    x = jnp.concatenate([fea_left, fea_right, valid_mask[0]], axis=1)
    x = jnp.transpose(x, (0, 2, 3, 1))
    x = _ref_conv(x, params["w0"].reshape(1, 1, *params["w0"].shape),
                  params["b0"])
    for blk in params["blocks"]:
        y = _ref_leaky(_ref_conv(x, blk["w1"], blk["b1"]))
        y = _ref_conv(y, blk["w2"], blk["b2"])
        x = _ref_leaky(x + y)
    x = _ref_conv(x, params["w_pen"], params["b_pen"])
    x = _ref_conv(x, params["w_last"], params["b_last"])
    return jnp.transpose(x, (0, 3, 1, 2))


# --------------------------------------------------------------------------
if __name__ == "__main__":
    B, C, H, W = 2, 8, 16, 16
    LAYERS = 2

    key = jax.random.PRNGKey(0)
    k1, k2, k3, kp = jax.random.split(key, 4)
    fea_left = jax.random.normal(k1, (B, C, H, W), jnp.float32)
    fea_right = jax.random.normal(k2, (B, C, H, W), jnp.float32)
    valid_mask = [
        (jax.random.uniform(k3, (B, 1, H, W)) > 0.5).astype(jnp.float32)
    ]

    params = init_params(kp, LAYERS, C)
    ref = reference_forward(params, fea_left, fea_right, valid_mask)

    # f32 compute: exact check against the XLA reference.
    out_f32 = jax.block_until_ready(
        transfer_forward(params, fea_left, fea_right, valid_mask,
                         compute_dtype=jnp.float32))
    assert out_f32.shape == (B, 3, H, W), out_f32.shape
    assert jnp.allclose(out_f32, ref, atol=1e-3, rtol=1e-3), (
        float(jnp.max(jnp.abs(out_f32 - ref))))

    # bf16 compute (production path on v6e/v7x): looser tolerance.
    out_bf16 = jax.block_until_ready(
        transfer_forward(params, fea_left, fea_right, valid_mask,
                         compute_dtype=jnp.bfloat16))
    assert out_bf16.shape == (B, 3, H, W), out_bf16.shape
    assert jnp.allclose(out_bf16, ref, atol=5e-2, rtol=5e-2), (
        float(jnp.max(jnp.abs(out_bf16 - ref))))

    print("KERNEL_OK")
</pallas_src>

<mosaic_0001>
module attributes {stable_mosaic.version = 11 : i64} {
  func.func @_conv1x1_kernel(%arg0: i32, %arg1: i32, %arg2: memref<1x17x256xf32, #tpu.memory_space<vmem>>, %arg3: memref<8x17xf32, #tpu.memory_space<vmem>>, %arg4: memref<8x1xf32, #tpu.memory_space<vmem>>, %arg5: memref<1x8x256xf32, #tpu.memory_space<vmem>>) attributes {dimension_semantics = [#tpu.dimension_semantics<parallel>, #tpu.dimension_semantics<parallel>], iteration_bounds = array<i64: 2, 1>, scalar_prefetch = 0 : i64, scratch_operands = 0 : i64, tpu.core_type = #tpu.core_type<tc>, window_params = [{transform_indices = @transform_0, window_bounds = array<i64: 1, 17, 256>}, {pipeline_mode = #tpu.pipeline_mode<synchronous>, transform_indices = @transform_1, window_bounds = array<i64: 8, 17>}, {pipeline_mode = #tpu.pipeline_mode<synchronous>, transform_indices = @transform_2, window_bounds = array<i64: 8, 1>}, {transform_indices = @transform_3, window_bounds = array<i64: 1, 8, 256>}]} {
    %c0 = arith.constant 0 : index
    %c0_0 = arith.constant 0 : index
    %0 = vector.load %arg3[%c0, %c0_0] : memref<8x17xf32, #tpu.memory_space<vmem>>, vector<8x17xf32>
    %c0_1 = arith.constant 0 : index
    %c0_2 = arith.constant 0 : index
    %c0_3 = arith.constant 0 : index
    %1 = vector.load %arg2[%c0_1, %c0_2, %c0_3] : memref<1x17x256xf32, #tpu.memory_space<vmem>>, vector<1x17x256xf32>
    %2 = vector.shape_cast %1 : vector<1x17x256xf32> to vector<17x256xf32>
    %cst = arith.constant dense<0.000000e+00> : vector<8x256xf32>
    %3 = tpu.matmul %0, %2, %cst {dimension_numbers = #tpu.dot_dimension_numbers<[1], [0], [0], [1], [0, 0, 1, 1], [], []>} : vector<8x17xf32>, vector<17x256xf32>, vector<8x256xf32> -> vector<8x256xf32>
    %c0_4 = arith.constant 0 : index
    %c0_5 = arith.constant 0 : index
    %4 = vector.load %arg4[%c0_4, %c0_5] : memref<8x1xf32, #tpu.memory_space<vmem>>, vector<8x1xf32>
    %5 = vector.broadcast %4 : vector<8x1xf32> to vector<8x256xf32>
    %6 = arith.addf %3, %5 : vector<8x256xf32>
    %c0_6 = arith.constant 0 : index
    %c0_7 = arith.constant 0 : index
    %c0_8 = arith.constant 0 : index
    %7 = vector.load %arg5[%c0_6, %c0_7, %c0_8] : memref<1x8x256xf32, #tpu.memory_space<vmem>>, vector<1x8x256xf32>
    %8 = vector.shape_cast %7 : vector<1x8x256xf32> to vector<8x256xf32>
    %9 = vector.shape_cast %6 : vector<8x256xf32> to vector<1x8x256xf32>
    tpu.vector_store %arg5[%c0_6, %c0_7, %c0_8], %9 {strides = array<i32>} : memref<1x8x256xf32, #tpu.memory_space<vmem>>, vector<1x8x256xf32>,
    return
  }
  func.func @transform_0(%arg0: i32, %arg1: i32) -> (i32, i32, i32) {
    %c0_i32 = arith.constant 0 : i32
    %c0_i32_0 = arith.constant 0 : i32
    return %arg0, %c0_i32, %arg1 : i32, i32, i32
  }
  func.func @transform_1(%arg0: i32, %arg1: i32) -> (i32, i32) {
    %c0_i32 = arith.constant 0 : i32
    %c0_i32_0 = arith.constant 0 : i32
    %c0_i32_1 = arith.constant 0 : i32
    return %c0_i32, %c0_i32_0 : i32, i32
  }
  func.func @transform_2(%arg0: i32, %arg1: i32) -> (i32, i32) {
    %c0_i32 = arith.constant 0 : i32
    %c0_i32_0 = arith.constant 0 : i32
    %c0_i32_1 = arith.constant 0 : i32
    return %c0_i32, %c0_i32_0 : i32, i32
  }
  func.func @transform_3(%arg0: i32, %arg1: i32) -> (i32, i32, i32) {
    %c0_i32 = arith.constant 0 : i32
    %c0_i32_0 = arith.constant 0 : i32
    return %arg0, %c0_i32, %arg1 : i32, i32, i32
  }
}

</mosaic_0001>

<llo_original>
// kernel: tpu_custom_call.1
$region0: #{tpu_custom_call.1}
  #allocation0 [shape = 'u32[]', space=smem, size = 0x4, offset = 0x4, fixed_abs, tag = 'smem constant byte address 0x4 - core index']
  #allocation1 [shape = 'u32[144,128]{1,0:T(1,128)}', space=vmem, size = 0x12000, scoped, tag = 'internal scratch']
  %s0 = inlined_call_operand.vmem [shape: f32[2,17,256], index: 0, kind: input, shape index: {}]
  %s1 = inlined_call_operand.vmem [shape: f32[8,17], index: 1, kind: input, shape index: {}]
  %s2 = inlined_call_operand.vmem [shape: f32[8,1], index: 2, kind: input, shape index: {}]
  %s3 = inlined_call_operand.hbm [shape: f32[2,8,256], index: 3, kind: output, shape index: {}]
  %s4 = sld [smem:[#allocation0]]
  $region45: #{tpu_custom_call.1} parent=0
    _
  %s6 = ssub.s32 1, %s4
  %s7 = scalar_select 0, %s6, %s4
  $region1: #{tpu_custom_call.1} parent=0
    #allocation2 [shape = 'u8[16384]{0}', space=vmem, size = 0x4000, scoped, tag = 'output window, operand 0']
    #allocation3 [shape = 's32[2]{0}', space=sflag, size = 0x8, scoped, tag = 'scoped memory for tpu_custom_call.1']
    %8 = vsyncpa [#allocation3], 0
    %s9 = scalar_lea.sflag [#allocation3], 1
    %10 = vsyncpa %s9, 0
    loop: start=0, step=1, limit=4
    $region2: #{tpu_custom_call.1} parent=1 // loop_pre_header
      _
    $region3: #{tpu_custom_call.1} parent=1 // loop_header
      %s12 = sphi 0, %s16
      %p13 = scmp.ge.s32.totalorder %s12, 4
      %s19 = sphi 0, %s31
      %s20 = sphi 0, %s27
      %s21 = sphi 0, %s19
      %s22 = sphi 0, %s20
      %s23 = sphi 0, %s21
      %s24 = sphi 0, %s22
      %s36 = sphi 0, %s38
      %s39 = sphi 0, %s36
      %s40 = sphi 0, %s39
      %s56 = sphi 0, %s40
      %s60 = sphi 0, %s60
      %s62 = sphi 0, %s60
      %s63 = sphi 0, %s62
      %s77 = sphi 0, %s63
      %s81 = sphi 0, %s81
      %s83 = sphi 0, %s81
      %s84 = sphi 0, %s83
      %s98 = sphi 0, %s84
      %s106 = sphi 0, %s108
      %s109 = sphi 0, %s106
      %s110 = sphi 0, %s109
      %s126 = sphi 0, %s110
    $region4: #{tpu_custom_call.1} parent=1 // loop_header_branch
      %15 = sbr.rel (%p13) target = $region8
    $region5: #{tpu_custom_call.1} parent=1 // loop_body
      %s17 = ssub.s32 %s12, 1
      %s18 = ssub.s32 %s12, 2
      %s25 = sadd.s32 1, %s20
      %p26 = scmp.ge.s32.totalorder %s25, 1
      %s27 = scalar_select %p26, 0, %s25
      %s28 = sadd.s32 1, %s19
      %s29 = scalar_select %p26, %s28, %s19
      %p30 = scmp.ge.s32.totalorder %s29, 2
      %s31 = scalar_select %p30, 0, %s29
      %s32 = ssub.s32 %s19, %s31
      %s33 = ssub.s32 %s20, %s27
      %s34 = sor.u32 %s32, %s33
      %p35 = scmp.eq.s32.totalorder %s34, 0
      %s37 = sadd.s32 %s36, 1
      %s38 = scalar_select %p35, %s36, %s37
      %p41 = pneg %p35
      %p42 = scmp.eq.s32.totalorder %s12, 1
      %p43 = por %p41, %p42
      %p44 = scmp.ne.s32.totalorder %s36, %s39
      %p45 = scmp.eq.s32.totalorder %s12, 0
      %p46 = por %p44, %p45
      %p47 = scmp.ne.s32.totalorder %s36, %s39
      %p48 = scmp.eq.s32.totalorder %s17, 1
      %p49 = por %p47, %p48
      %p50 = scmp.ne.s32.totalorder %s39, %s40
      %p51 = scmp.eq.s32.totalorder %s17, 0
      %p52 = por %p50, %p51
      %p53 = scmp.ne.s32.totalorder %s39, %s40
      %p54 = scmp.eq.s32.totalorder %s18, 1
      %p55 = por %p53, %p54
      %p57 = scmp.ne.s32.totalorder %s40, %s56
      %p58 = scmp.eq.s32.totalorder %s18, 0
      %p59 = por %p57, %p58
      %s61 = sadd.s32 %s60, 1
      %p64 = scmp.eq.s32.totalorder %s12, 1
      %p65 = scmp.ne.s32.totalorder %s60, %s62
      %p66 = scmp.eq.s32.totalorder %s12, 0
      %p67 = por %p65, %p66
      %p68 = scmp.ne.s32.totalorder %s60, %s62
      %p69 = scmp.eq.s32.totalorder %s17, 1
      %p70 = por %p68, %p69
      %p71 = scmp.ne.s32.totalorder %s62, %s63
      %p72 = scmp.eq.s32.totalorder %s17, 0
      %p73 = por %p71, %p72
      %p74 = scmp.ne.s32.totalorder %s62, %s63
      %p75 = scmp.eq.s32.totalorder %s18, 1
      %p76 = por %p74, %p75
      %p78 = scmp.ne.s32.totalorder %s63, %s77
      %p79 = scmp.eq.s32.totalorder %s18, 0
      %p80 = por %p78, %p79
      %s82 = sadd.s32 %s81, 1
      %p85 = scmp.eq.s32.totalorder %s12, 1
      %p86 = scmp.ne.s32.totalorder %s81, %s83
      %p87 = scmp.eq.s32.totalorder %s12, 0
      %p88 = por %p86, %p87
      %p89 = scmp.ne.s32.totalorder %s81, %s83
      %p90 = scmp.eq.s32.totalorder %s17, 1
      %p91 = por %p89, %p90
      %p92 = scmp.ne.s32.totalorder %s83, %s84
      %p93 = scmp.eq.s32.totalorder %s17, 0
      %p94 = por %p92, %p93
      %p95 = scmp.ne.s32.totalorder %s83, %s84
      %p96 = scmp.eq.s32.totalorder %s18, 1
      %p97 = por %p95, %p96
      %p99 = scmp.ne.s32.totalorder %s84, %s98
      %p100 = scmp.eq.s32.totalorder %s18, 0
      %p101 = por %p99, %p100
      %s102 = ssub.s32 %s19, %s31
      %s103 = ssub.s32 %s20, %s27
      %s104 = sor.u32 %s102, %s103
      %p105 = scmp.eq.s32.totalorder %s104, 0
      %s107 = sadd.s32 %s106, 1
      %s108 = scalar_select %p105, %s106, %s107
      %p111 = pneg %p105
      %p112 = scmp.eq.s32.totalorder %s12, 1
      %p113 = por %p111, %p112
      %p114 = scmp.ne.s32.totalorder %s106, %s109
      %p115 = scmp.eq.s32.totalorder %s12, 0
      %p116 = por %p114, %p115
      %p117 = scmp.ne.s32.totalorder %s106, %s109
      %p118 = scmp.eq.s32.totalorder %s17, 1
      %p119 = por %p117, %p118
      %p120 = scmp.ne.s32.totalorder %s109, %s110
      %p121 = scmp.eq.s32.totalorder %s17, 0
      %p122 = por %p120, %p121
      %p123 = scmp.ne.s32.totalorder %s109, %s110
      %p124 = scmp.eq.s32.totalorder %s18, 1
      %p125 = por %p123, %p124
      %p127 = scmp.ne.s32.totalorder %s110, %s126
      %p128 = scmp.eq.s32.totalorder %s18, 0
      %p129 = por %p127, %p128
      %p130 = scmp.le.s32.totalorder 1, %s12
      %p131 = scmp.lt.s32.totalorder %s12, 3
      %p132 = pnand %p130, %p131
      %p133 = pneg %p132
      // Predicated region
      $region9: #{tpu_custom_call.1} parent=5 // pred_check
        _
      $region10: #{tpu_custom_call.1} parent=5 // pred_check_branch
        %135 = sbr.rel (%p132) target = $region12
      $region11: #{tpu_custom_call.1} parent=5 // pred_region
        %s136 = ssub.s32 %s12, 1
        // Predicated region
        $region13: #{tpu_custom_call.1} parent=11 // pred_check
          %p137 = pneg %p73
        $region14: #{tpu_custom_call.1} parent=11 // pred_check_branch
          %139 = sbr.rel (%p137) target = $region16
        $region15: #{tpu_custom_call.1} parent=11 // pred_region
          _
        $region16: #{tpu_custom_call.1} parent=11 // pred_fallthru
          _
        // Predicated region
        $region17: #{tpu_custom_call.1} parent=11 // pred_check
          %p140 = pneg %p94
        $region18: #{tpu_custom_call.1} parent=11 // pred_check_branch
          %142 = sbr.rel (%p140) target = $region20
        $region19: #{tpu_custom_call.1} parent=11 // pred_region
          _
        $region20: #{tpu_custom_call.1} parent=11 // pred_fallthru
          _
      $region12: #{tpu_custom_call.1} parent=5 // pred_fallthru
        _
      %p143 = scmp.lt.s32.totalorder %s12, 2
      // Predicated region
      $region21: #{tpu_custom_call.1} parent=5 // pred_check
        %p144 = pneg %p143
      $region22: #{tpu_custom_call.1} parent=5 // pred_check_branch
        %146 = sbr.rel (%p144) target = $region24
      $region23: #{tpu_custom_call.1} parent=5 // pred_region
        // Predicated region
        $region25: #{tpu_custom_call.1} parent=23 // pred_check
          %p147 = pneg %p46
        $region26: #{tpu_custom_call.1} parent=23 // pred_check_branch
          %149 = sbr.rel (%p147) target = $region28
        $region27: #{tpu_custom_call.1} parent=23 // pred_region
          %s150 = smul.u32 2, %s20
          %p151 = scmp.lt.s32.totalorder %s19, 1
          %s152 = scalar_select %p151, %s19, 1
          %p153 = scmp.lt.s32.totalorder %s150, 1
          %s154 = scalar_select %p153, %s150, 1
          %s155 = smul.addr %s152, 6
          %s156 = sadd.s32 %s154, %s155
          %s157 = smul.addr %s156, 8
          %s158 = scalar_lea.vmem %s0, %s157
          %s159 = smul.u32 2, %s20
        $region28: #{tpu_custom_call.1} parent=23 // pred_fallthru
          _
      $region24: #{tpu_custom_call.1} parent=5 // pred_fallthru
        _
      %p160 = scmp.le.s32.totalorder 1, %s12
      %p161 = scmp.lt.s32.totalorder %s12, 3
      %p162 = pnand %p160, %p161
      %p163 = pneg %p162
      // Predicated region
      $region29: #{tpu_custom_call.1} parent=5 // pred_check
        _
      $region30: #{tpu_custom_call.1} parent=5 // pred_check_branch
        %165 = sbr.rel (%p162) target = $region32
      $region31: #{tpu_custom_call.1} parent=5 // pred_region
        %s166 = ssub.s32 %s12, 1
        %s167 = smul.u32 2, %s22
        %p168 = scmp.lt.s32.totalorder %s21, 1
        %s169 = scalar_select %p168, %s21, 1
        %p170 = scmp.lt.s32.totalorder %s167, 1
        %s171 = scalar_select %p170, %s167, 1
        %s172 = smul.addr %s169, 6
        %s173 = sadd.s32 %s171, %s172
        %s174 = smul.addr %s173, 8
        %s175 = scalar_lea.vmem %s0, %s174
        %p176 = pneg %p52
        %p177 = pneg %p49
        %p178 = pneg %p73
        %p179 = pneg %p70
        %p180 = pneg %p94
        %p181 = pneg %p91
        %p182 = pneg %p122
        %p183 = pneg %p119
        %s184 = sand.u32 %s109, 1
        %s185 = scalar_lea.sflag [#allocation3], %s184
        %s186 = sand.u32 %s109, 1
        %s187 = smul.addr %s186, 16
        %s188 = scalar_lea.vmem [#allocation2], %s187
        %s189 = smul.u32 2, %s22
        %p190 = scmp.lt.s32.totalorder %s21, 1
        %s191 = scalar_select %p190, %s21, 1
        %p192 = scmp.lt.s32.totalorder %s189, 1
        %s193 = scalar_select %p192, %s189, 1
        %s194 = smul.addr %s191, 6
        %s195 = sadd.s32 %s193, %s194
        %s196 = smul.addr %s195, 8
        %s197 = scalar_lea.vmem %s0, %s196
        %s198 = smul.u32 2, %s22
        %s199 = smul.u32 2, %s22
        %v200 = vld [vmem:[%s1] sm:$0xff]
        %v201 = vld [vmem:[%s197] sm:$0xff]
        %v202 = vld [vmem:[%s197 + $0x8] sm:$0xff]
        %v203 = vld [vmem:[%s197 + $0x10] sm:$0xff]
        %v204 = vld [vmem:[%s197 + $0x18] sm:$0xff]
        %v205 = vld [vmem:[%s197 + $0x20] sm:$0x1]
        %v206 = vld [vmem:[%s197 + $0x28] sm:$0x1]
        %v207 = vld [vmem:[%s2] sm:$0xff]
        %209 = vset.pattern.permute.xlu0 0
        %210 = vperm.xlu0 %209, %v207
        %v211 = vpop.permute.xlu0 %210
        %vm213 = vcmask 138240
        %v215 = vsel %vm213, %v200, 0
        %vm217 = vcmask 1040384
        %v219 = vsel %vm217, %v205, 0
        %v222 = vsel %vm217, %v206, 0
        %224 = vmatprep.subr.mxu0 %v202
        %225 = vmatpush1.msra.mxu0 %v201
        %226 = vmatprep.subr.mxu0 %v204
        %227 = vmatpush1.msra.mxu0 %v203
        %228 = vmatprep.subr.mxu0 %v222
        %229 = vmatpush1.msra.mxu0 %v219
        %230 = vmatprep.subr.mxu0 0.0
        %231 = vmatpush1.msra.mxu0 0.0
        %232 = vmatprep.subr.mxu0 0.0
        %233 = vmatpush1.msra.mxu0 0.0
        %234 = vmatprep.subr.mxu0 0.0
        %235 = vmatpush1.msra.mxu0 0.0
        %236 = vmatprep.subr.mxu0 0.0
        %237 = vmatpush1.msra.mxu0 0.0
        %238 = vmatprep.subr.mxu0 0.0
        %239 = vmatpush1.msra.mxu0 0.0
        %240 = vmatprep.subr.mxu0 0.0
        %241 = vmatpush1.msra.mxu0 0.0
        %242 = vmatprep.subr.mxu0 0.0
        %243 = vmatpush1.msra.mxu0 0.0
        %244 = vmatprep.subr.mxu0 0.0
        %245 = vmatpush1.msra.mxu0 0.0
        %246 = vmatprep.subr.mxu0 0.0
        %247 = vmatpush1.msra.mxu0 0.0
        %248 = vmatprep.subr.mxu0 0.0
        %249 = vmatpush1.msra.mxu0 0.0
        %250 = vmatprep.subr.mxu0 0.0
        %251 = vmatpush1.msra.mxu0 0.0
        %252 = vmatprep.subr.mxu0 0.0
        %253 = vmatpush1.msra.mxu0 0.0
        %254 = vmatprep.subr.mxu0 0.0
        %255 = vmatpush1.msra.mxu0 0.0
        %256 = vmatprep.subr.mxu0 0.0
        %257 = vmatpush1.msra.mxu0 0.0
        %258 = vmatprep.subr.mxu0 0.0
        %259 = vmatpush1.msra.mxu0 0.0
        %260 = vmatprep.subr.mxu0 0.0
        %261 = vmatpush1.msra.mxu0 0.0
        %262 = vmatprep.subr.mxu0 0.0
        %263 = vmatpush1.msra.mxu0 0.0
        %264 = vmatprep.subr.mxu0 0.0
        %265 = vmatpush1.msra.mxu0 0.0
        %266 = vmatprep.subr.mxu0 0.0
        %267 = vmatpush1.msra.mxu0 0.0
        %268 = vmatprep.subr.mxu0 0.0
        %269 = vmatpush1.msra.mxu0 0.0
        %270 = vmatprep.subr.mxu0 0.0
        %271 = vmatpush1.msra.mxu0 0.0
        %272 = vmatprep.subr.mxu0 0.0
        %273 = vmatpush1.msra.mxu0 0.0
        %274 = vmatprep.subr.mxu0 0.0
        %275 = vmatpush1.msra.mxu0 0.0
        %276 = vmatprep.subr.mxu0 0.0
        %277 = vmatpush1.msra.mxu0 0.0
        %278 = vmatprep.subr.mxu0 0.0
        %279 = vmatpush1.msra.mxu0 0.0
        %280 = vmatprep.subr.mxu0 0.0
        %281 = vmatpush1.msra.mxu0 0.0
        %282 = vmatprep.subr.mxu0 0.0
        %283 = vmatpush1.msra.mxu0 0.0
        %284 = vmatprep.subr.mxu0 0.0
        %285 = vmatpush1.msra.mxu0 0.0
        %286 = vmatprep.subr.mxu0 0.0
        %287 = vmatpush1.msra.mxu0 0.0
        %288 = vmatprep.mubr.f32.mxu0 0.0
        %289 = vmatmul.mubr.f32.gmra.mrb[0].mxu0 %v215
        %v290 = vpop.f32.mrb[0].mxu0
        %v291 = vadd.f32 %v211, %v290
        %v292 = vpop.f32.mrb[0].mxu0
        %v293 = vadd.f32 %v211, %v292
        %294 = vdwg.mxu0
        %295 = vst [vmem:[%s188] sm:$0xff] %v291
        %296 = vst [vmem:[%s188 + $0x8] sm:$0xff] %v293
        %s297 = sand.u32 %s109, 1
        %s298 = scalar_lea.sflag [#allocation3], %s297
        %s299 = sand.u32 %s109, 1
        %s300 = smul.addr %s299, 16
        %s301 = scalar_lea.vmem [#allocation2], %s300
        // Predicated region
        $region33: #{tpu_custom_call.1} parent=31 // pred_check
          %p302 = pneg %p119
        $region34: #{tpu_custom_call.1} parent=31 // pred_check_branch
          %304 = sbr.rel (%p302) target = $region36
        $region35: #{tpu_custom_call.1} parent=31 // pred_region
          %s305 = smul.u32 2, %s22
          %s307 = ssub.s32 256, 256
          %308 = vsyncadd %s298, %s307
          %s309 = smul.addr %s21, 2
          %s310 = sadd.s32 %s305, %s309
          %s311 = smul.addr %s310, 128
          %s312 = scalar_lea.hbm %s3, %s311
          %s314 = sshll.u32 %s301, 4
          %s315 = int_to_ptr.vmem [resolvable:$true] %s314
          %317 = dma.vmem_to_hbm [thread:$0]  %s315, 256, %s312, %s298
        $region36: #{tpu_custom_call.1} parent=31 // pred_fallthru
          _
      $region32: #{tpu_custom_call.1} parent=5 // pred_fallthru
        _
      %p318 = scmp.le.s32.totalorder 2, %s12
      // Predicated region
      $region37: #{tpu_custom_call.1} parent=5 // pred_check
        %p319 = pneg %p318
      $region38: #{tpu_custom_call.1} parent=5 // pred_check_branch
        %321 = sbr.rel (%p319) target = $region40
      $region39: #{tpu_custom_call.1} parent=5 // pred_region
        %s322 = ssub.s32 %s12, 2
        // Predicated region
        $region41: #{tpu_custom_call.1} parent=39 // pred_check
          %p323 = pneg %p125
        $region42: #{tpu_custom_call.1} parent=39 // pred_check_branch
          %325 = sbr.rel (%p323) target = $region44
        $region43: #{tpu_custom_call.1} parent=39 // pred_region
          %s326 = sand.u32 %s110, 1
          %s327 = scalar_lea.sflag [#allocation3], %s326
          %s328 = sand.u32 %s110, 1
          %s329 = smul.addr %s328, 16
          %s330 = scalar_lea.vmem [#allocation2], %s329
          %331 = dma.done %s327, 256
        $region44: #{tpu_custom_call.1} parent=39 // pred_fallthru
          _
      $region40: #{tpu_custom_call.1} parent=5 // pred_fallthru
        _
    $region6: #{tpu_custom_call.1} parent=1 // loop_footer
      %s16 = sadd.s32 1, %s12
    $region7: #{tpu_custom_call.1} parent=1 // loop_footer_branch
      %11 = sbr.rel target = $region3
    $region8: #{tpu_custom_call.1} parent=1 // loop_exit
      _
    %332 = vsyncpa [#allocation3], 1
    %s333 = scalar_lea.sflag [#allocation3], 1
    %334 = vsyncpa %s333, 1

</llo_original>
